<compile_context>
chip_gen: v7x
topology: tpu7x:2x2x1
jax: 0.10.0
libtpu: 0.0.40
codegen_flags: <defaults>
</compile_context>

<pallas_src>
import jax
import jax.numpy as jnp
from jax.experimental import pallas as pl
from jax.experimental.pallas import tpu as pltpu


def _round_up(n, m):
    return ((n + m - 1) // m) * m


def _reward_kernel(xt_ref, out_ref):
    # xt_ref: (F, TILE_B) -- row 0 is theta, rows 1: are "rest".
    xt = xt_ref[...]
    theta = xt[0:1, :]            # (1, TILE_B), broadcast over output rows
    rest = xt[1:, :]              # (F-1, TILE_B)
    # 1 - 3*|theta/0.5|/4 - (|rest/2.5|/2)**2  ==  1 - 1.5*|theta| - 0.04*rest^2
    reward = 1.0 - 1.5 * jnp.abs(theta) - 0.04 * (rest * rest)
    out_ref[...] = reward.astype(out_ref.dtype)


def reward_head_cartpole_lane_major(xt, *, tile_b=65536, out_dtype=None):
    """Lane-dense core.  xt: (F, B) feature-major.  Returns (F-1, B).

    Batch maps to TPU lanes -> unmasked, lane-dense loads/stores.  Use this
    entry point directly if your surrounding pipeline is already in (F, B)
    layout; it avoids the wrapper transposes entirely.
    """
    F, B = xt.shape
    assert F >= 2, "need at least 2 features (theta + rest)"
    out_dtype = xt.dtype if out_dtype is None else out_dtype

    # Large lane tile (MiB-scale blocks -> ~85%+ of HBM roofline), but keep
    # at least 2 grid steps when possible so v7x can split the 'parallel'
    # axis across its two TensorCores.
    tb = min(tile_b, _round_up(pl.cdiv(B, 2), 128))
    tb = max(tb, 128)
    Bp = _round_up(B, tb)
    if Bp != B:
        xt = jnp.pad(xt, ((0, 0), (0, Bp - B)))

    grid = (Bp // tb,)
    out = pl.pallas_call(
        _reward_kernel,
        out_shape=jax.ShapeDtypeStruct((F - 1, Bp), out_dtype),
        grid=grid,
        in_specs=[pl.BlockSpec((F, tb), lambda i: (0, i))],
        out_specs=pl.BlockSpec((F - 1, tb), lambda i: (0, i)),
        compiler_params=pltpu.CompilerParams(
            dimension_semantics=("parallel",)),
    )(xt)
    return out[:, :B]


def reward_function_head_cartpole(x, *, tile_b=65536, min_pallas_batch=32768,
                                  out_dtype=None, force_pallas=False):
    """x: (B, F). Returns (B, F-1). Matches the PyTorch module's forward."""
    B, F = x.shape
    assert F >= 2, "need at least 2 features (theta + rest)"
    out_dtype = x.dtype if out_dtype is None else out_dtype

    # Small-batch fallback: at real CartPole sizes the whole problem is one
    # vreg; a fused XLA expression beats the kernel launch + transposes.
    if B < min_pallas_batch and not force_pallas:
        theta = x[:, :1]
        rest = x[:, 1:]
        return (1.0 - 1.5 * jnp.abs(theta) - 0.04 * rest * rest).astype(out_dtype)

    out_t = reward_head_cartpole_lane_major(
        x.T, tile_b=tile_b, out_dtype=out_dtype)
    return out_t.T


def _reference(x):
    # Mirrors the PyTorch forward exactly.
    theta = x[:, :1]
    rest = x[:, 1:]
    return 1.0 - 3.0 * jnp.abs(theta / 0.5) / 4.0 - (jnp.abs(rest / 2.5) / 2.0) ** 2


if __name__ == "__main__":
    key = jax.random.PRNGKey(0)

    # CartPole-like observation: 4 features (theta + 3 others), small batch.
    B, F = 8, 4
    x_small = jax.random.normal(key, (B, F), dtype=jnp.float32)

    # 1) Default path at CartPole size (takes the fused-XLA fallback).
    out_fb = jax.block_until_ready(reward_function_head_cartpole(x_small))
    assert out_fb.shape == (B, F - 1)
    assert jnp.allclose(out_fb, _reference(x_small), atol=1e-5, rtol=1e-5)

    # 2) Force the Pallas path at the same small shape (exercises padding,
    #    single-step grid).
    out_p = jax.block_until_ready(
        reward_function_head_cartpole(x_small, force_pallas=True))
    assert out_p.shape == (B, F - 1)
    assert jnp.allclose(out_p, _reference(x_small), atol=1e-5, rtol=1e-5)

    # 3) Force the Pallas path at a batch that produces a multi-step grid
    #    (B=1000 -> tile 512, 2 grid steps, lane padding 1000 -> 1024).
    B2 = 1000
    x_med = jax.random.normal(jax.random.PRNGKey(0), (B2, F), dtype=jnp.float32)
    out_p2 = jax.block_until_ready(
        reward_function_head_cartpole(x_med, force_pallas=True))
    assert out_p2.shape == (B2, F - 1)
    assert jnp.allclose(out_p2, _reference(x_med), atol=1e-5, rtol=1e-5)

    print("KERNEL_OK")
</pallas_src>

<mosaic_0001>
module attributes {stable_mosaic.version = 11 : i64} {
  func.func @_reward_kernel(%arg0: i32, %arg1: memref<4x128xf32, #tpu.memory_space<vmem>>, %arg2: memref<3x128xf32, #tpu.memory_space<vmem>>) attributes {dimension_semantics = [#tpu.dimension_semantics<parallel>], iteration_bounds = array<i64: 1>, scalar_prefetch = 0 : i64, scratch_operands = 0 : i64, tpu.core_type = #tpu.core_type<tc>, window_params = [{transform_indices = @transform_0, window_bounds = array<i64: 4, 128>}, {transform_indices = @transform_1, window_bounds = array<i64: 3, 128>}]} {
    %c0 = arith.constant 0 : index
    %c0_0 = arith.constant 0 : index
    %0 = vector.load %arg1[%c0, %c0_0] : memref<4x128xf32, #tpu.memory_space<vmem>>, vector<4x128xf32>
    %1 = vector.extract_strided_slice %0 {offsets = [0, 0], sizes = [1, 128], strides = [1, 1]} : vector<4x128xf32> to vector<1x128xf32>
    %2 = vector.extract_strided_slice %0 {offsets = [1, 0], sizes = [3, 128], strides = [1, 1]} : vector<4x128xf32> to vector<3x128xf32>
    %3 = math.absf %1 : vector<1x128xf32>
    %cst = arith.constant 1.500000e+00 : f32
    %4 = vector.broadcast %cst : f32 to vector<1x128xf32>
    %5 = arith.mulf %4, %3 : vector<1x128xf32>
    %cst_1 = arith.constant 1.000000e+00 : f32
    %6 = vector.broadcast %cst_1 : f32 to vector<1x128xf32>
    %7 = arith.subf %6, %5 : vector<1x128xf32>
    %8 = arith.mulf %2, %2 : vector<3x128xf32>
    %cst_2 = arith.constant 4.000000e-02 : f32
    %9 = vector.broadcast %cst_2 : f32 to vector<3x128xf32>
    %10 = arith.mulf %9, %8 : vector<3x128xf32>
    %11 = vector.broadcast %7 : vector<1x128xf32> to vector<3x128xf32>
    %12 = arith.subf %11, %10 : vector<3x128xf32>
    %c0_3 = arith.constant 0 : index
    %c0_4 = arith.constant 0 : index
    %13 = vector.load %arg2[%c0_3, %c0_4] : memref<3x128xf32, #tpu.memory_space<vmem>>, vector<3x128xf32>
    tpu.vector_store %arg2[%c0_3, %c0_4], %12 {strides = array<i32>} : memref<3x128xf32, #tpu.memory_space<vmem>>, vector<3x128xf32>,
    return
  }
  func.func @transform_0(%arg0: i32) -> (i32, i32) {
    %c0_i32 = arith.constant 0 : i32
    %c0_i32_0 = arith.constant 0 : i32
    return %c0_i32, %arg0 : i32, i32
  }
  func.func @transform_1(%arg0: i32) -> (i32, i32) {
    %c0_i32 = arith.constant 0 : i32
    %c0_i32_0 = arith.constant 0 : i32
    return %c0_i32, %arg0 : i32, i32
  }
}

</mosaic_0001>

<llo_original>
// kernel: tpu_custom_call.1
$region0: #{tpu_custom_call.1}
  #allocation0 [shape = 'u32[]', space=smem, size = 0x4, offset = 0x4, fixed_abs, tag = 'smem constant byte address 0x4 - core index']
  #allocation1 [shape = 'u32[144,128]{1,0:T(1,128)}', space=vmem, size = 0x12000, scoped, tag = 'internal scratch']
  %s0 = inlined_call_operand.hbm [shape: f32[4,128], index: 0, kind: input, shape index: {}]
  %s1 = inlined_call_operand.hbm [shape: f32[3,128], index: 1, kind: output, shape index: {}]
  %s2 = sld [smem:[#allocation0]]
  $region18: #{tpu_custom_call.1} parent=0
    _
  %s4 = ssub.s32 1, %s2
  %s5 = scalar_select 0, %s4, %s2
  $region1: #{tpu_custom_call.1} parent=0
    #allocation2 [shape = 'u8[2048]{0}', space=vmem, size = 0x800, scoped, tag = 'input window, operand 0, single buffered']
    #allocation3 [shape = 's32[1]{0}', space=sflag, size = 0x4, scoped, tag = 'scoped memory for tpu_custom_call.1']
    #allocation4 [shape = 's32[1]{0}', space=sflag, size = 0x4, scoped, tag = 'scoped memory for tpu_custom_call.1']
    #allocation5 [shape = 'u8[2048]{0}', space=vmem, size = 0x800, scoped, tag = 'output window, operand 0, single buffered']
    %6 = vsyncpa [#allocation3], 0
    %7 = vsyncpa [#allocation4], 0
    // Predicated region
    $region2: #{tpu_custom_call.1} parent=1 // pred_check
      _
    $region3: #{tpu_custom_call.1} parent=1 // pred_check_branch
      %9 = sbr.rel (0) target = $region5
    $region4: #{tpu_custom_call.1} parent=1 // pred_region
      %s11 = ssub.s32 64, 64
      %12 = vsyncadd [#allocation3], %s11
      %s14 = sshll.u32 [#allocation2], 4
      %s15 = int_to_ptr.vmem [resolvable:$true] %s14
      %17 = dma.hbm_to_vmem [thread:$0]  %s0, 64, %s15, [#allocation3]
    $region5: #{tpu_custom_call.1} parent=1 // pred_fallthru
      _
    // Predicated region
    $region6: #{tpu_custom_call.1} parent=1 // pred_check
      _
    $region7: #{tpu_custom_call.1} parent=1 // pred_check_branch
      %19 = sbr.rel (0) target = $region9
    $region8: #{tpu_custom_call.1} parent=1 // pred_region
      %20 = dma.done [#allocation3], 64
    $region9: #{tpu_custom_call.1} parent=1 // pred_fallthru
      _
    %v21 = vld [vmem:[#allocation2] sm:$0xf]
    %v22 = vand.u32 2147483647, %v21
    %v23 = vmul.f32 %v22, 1.5
    %v24 = vsub.f32 1.0, %v23
    %v25 = vmul.f32 %v21, %v21
    %v26 = vmul.f32 %v25, 0.04
    %v27 = vlaneseq
    %v28 = vshrl.u32 %v27, 7
    %v29 = vsub.s32 0, %v28
    %v30 = vrot.slane %v24, %v29
    %v31 = vsub.f32 %v30, %v26
    %32 = vst [vmem:[#allocation5 - $0x1] sm:$0xe] %v31
    // Predicated region
    $region10: #{tpu_custom_call.1} parent=1 // pred_check
      _
    $region11: #{tpu_custom_call.1} parent=1 // pred_check_branch
      %34 = sbr.rel (0) target = $region13
    $region12: #{tpu_custom_call.1} parent=1 // pred_region
      %s36 = ssub.s32 64, 64
      %37 = vsyncadd [#allocation4], %s36
      %s39 = sshll.u32 [#allocation5], 4
      %s40 = int_to_ptr.vmem [resolvable:$true] %s39
      %42 = dma.vmem_to_hbm [thread:$0]  %s40, 64, %s1, [#allocation4]
    $region13: #{tpu_custom_call.1} parent=1 // pred_fallthru
      _
    // Predicated region
    $region14: #{tpu_custom_call.1} parent=1 // pred_check
      _
    $region15: #{tpu_custom_call.1} parent=1 // pred_check_branch
      %44 = sbr.rel (0) target = $region17
    $region16: #{tpu_custom_call.1} parent=1 // pred_region
      %45 = dma.done [#allocation4], 64
    $region17: #{tpu_custom_call.1} parent=1 // pred_fallthru
      _
    %46 = vsyncpa [#allocation3], 1
    %47 = vsyncpa [#allocation4], 1

</llo_original>
